<compile_context>
chip_gen: v5e
topology: v5e:2x2
jax: 0.10.0
libtpu: 0.0.40
codegen_flags: <defaults>
</compile_context>

<pallas_src>
import functools

import jax
import jax.numpy as jnp
from jax.experimental import pallas as pl
from jax.experimental.pallas import tpu as pltpu


LN_EPS = 1e-5  # torch.nn.LayerNorm default


def _round_up(a: int, b: int) -> int:
    return (a + b - 1) // b * b


def _mlp_deep_residual_kernel(num_layers, k_tiles,
                              x_ref, w0_ref, b0_ref,
                              blk_w_ref, blk_bgb_ref,
                              wf_ref, bf_ref,
                              out_ref, acc_ref):
    """Grid = (batch_tiles, k_tiles + num_layers + 1).

    acc_ref: (TM, HIDDEN) f32 scratch, persists across the step axis and holds
    first the layer-0 accumulator, then the running activation h.
    """
    j = pl.program_id(1)

    # --- step 0: zero the accumulator -----------------------------------
    @pl.when(j == 0)
    def _():
        acc_ref[...] = jnp.zeros_like(acc_ref)

    # --- steps [0, k_tiles): first linear, K-tiled accumulation ---------
    @pl.when(j < k_tiles)
    def _():
        acc_ref[...] += jnp.dot(x_ref[...], w0_ref[...],
                                preferred_element_type=jnp.float32)

    @pl.when(j == k_tiles - 1)
    def _():
        acc_ref[...] += b0_ref[...]          # bias of the first linear

    # --- steps [k_tiles, k_tiles + L): one residual block per step ------
    @pl.when(jnp.logical_and(j >= k_tiles, j < k_tiles + num_layers))
    def _():
        h = acc_ref[...]                     # (TM, H) f32
        w_i = blk_w_ref[0]                   # (H, H) bf16 -- this layer only
        bgb = blk_bgb_ref[0]                 # (3, H) f32
        b_i = bgb[0:1, :]
        gamma_i = bgb[1:2, :]
        beta_i = bgb[2:3, :]

        # Linear (bf16 MXU, f32 accumulate)
        z = jnp.dot(h.astype(jnp.bfloat16), w_i,
                    preferred_element_type=jnp.float32) + b_i

        # LayerNorm, centered two-pass stats (no cancellation), fused
        # affine + residual + ReLU.
        hidden = z.shape[-1]
        inv_h = 1.0 / hidden
        mean = jnp.sum(z, axis=-1, keepdims=True) * inv_h
        zc = z - mean
        var = jnp.sum(zc * zc, axis=-1, keepdims=True) * inv_h
        a = gamma_i * jax.lax.rsqrt(var + LN_EPS)        # (TM, H)
        acc_ref[...] = jnp.maximum(zc * a + beta_i + h, 0.0)

    # --- last step: final projection into lane-dense padded block -------
    @pl.when(j == k_tiles + num_layers)
    def _():
        out_ref[...] = (
            jnp.dot(acc_ref[...].astype(jnp.bfloat16), wf_ref[...],
                    preferred_element_type=jnp.float32) + bf_ref[...]
        ).astype(out_ref.dtype)


def mlp_classifier_deep_residual(x, params, *, num_layers, tm=256, tk=512,
                                 w0_resident_bytes=16 * 1024 * 1024):
    """x: (b, 3, H, W) float32.  Returns (b, num_classes) float32 logits.

    tm: batch tile (use 128 on v5e, 256 on v6e/v7x).
    tk: K tile for the first linear when w0 cannot be held resident.
    """
    b = x.shape[0]
    x_flat = x.reshape(b, -1)                 # same ordering as torch .view(b, -1)
    d = x_flat.shape[1]
    hidden = params["w0"].shape[1]
    num_classes = params["wf"].shape[1]

    # --- Batch tile: multiple of 16 (bf16 sublane pack); try to give v7x's
    # two TensorCores at least two tiles on the "parallel" axis. -------------
    tm_eff = min(tm, _round_up(b, 16))
    if b > 16 and _round_up(b, tm_eff) // tm_eff < 2:
        tm_eff = _round_up((b + 1) // 2, 16)
    b_pad = _round_up(b, tm_eff)

    # --- First-layer K tiling: hold w0 fully resident (single K block,
    # constant index -> DMA'd once for the whole grid) when it's small,
    # otherwise stream tk-wide K tiles. --------------------------------------
    if d * hidden * 2 <= w0_resident_bytes:
        tk_eff = _round_up(d, 256)
    else:
        tk_eff = _round_up(tk, 256)
    k_pad = _round_up(d, tk_eff)
    k_tiles = k_pad // tk_eff

    nc_pad = _round_up(num_classes, 128)      # lane-dense output
    n_steps = k_tiles + num_layers + 1

    # --- Pad + cast inputs/weights (zero padding contributes nothing) -------
    x_p = jnp.zeros((b_pad, k_pad), jnp.bfloat16)
    x_p = x_p.at[:b, :d].set(x_flat.astype(jnp.bfloat16))

    w0_p = jnp.zeros((k_pad, hidden), jnp.bfloat16)
    w0_p = w0_p.at[:d, :].set(params["w0"].astype(jnp.bfloat16))
    b0 = params["b0"].reshape(1, hidden).astype(jnp.float32)

    # Stacked per-block params: (L, H, H) bf16 weights, (L, 3, H) f32 b/g/b.
    blk_w = jnp.stack([blk["w"] for blk in params["blocks"]]).astype(jnp.bfloat16)
    blk_bgb = jnp.stack([
        jnp.concatenate([blk["b"].reshape(1, hidden),
                         blk["gamma"].reshape(1, hidden),
                         blk["beta"].reshape(1, hidden)], axis=0)
        for blk in params["blocks"]
    ]).astype(jnp.float32)

    wf_p = jnp.zeros((hidden, nc_pad), jnp.bfloat16)
    wf_p = wf_p.at[:, :num_classes].set(params["wf"].astype(jnp.bfloat16))
    bf_p = jnp.zeros((1, nc_pad), jnp.float32)
    bf_p = bf_p.at[:, :num_classes].set(params["bf"].reshape(1, num_classes))

    # --- VMEM budget from the actual (double-buffered) tile sizes -----------
    vmem_bytes = (
        2 * tm_eff * tk_eff * 2          # x tile (bf16, x2 buffers)
        + 2 * tk_eff * hidden * 2        # w0 tile
        + 2 * hidden * 4                 # b0
        + 2 * hidden * hidden * 2        # ONE layer weight (streamed, x2)
        + 2 * 3 * hidden * 4             # one layer bias/gamma/beta
        + 2 * hidden * nc_pad * 2        # wf
        + 2 * nc_pad * 4                 # bf
        + 2 * tm_eff * nc_pad * 4        # out tile
        + tm_eff * hidden * 4            # f32 accumulator scratch
    )
    vmem_limit = min(max(2 * vmem_bytes, 32 * 1024 * 1024), 128 * 1024 * 1024)

    # --- Index maps ----------------------------------------------------------
    # During the K phase the layer index is pinned to 0 (layer-0 weight
    # prefetch overlaps the K sweep); during layer steps it advances one layer
    # per step; during the final projection it stays at L-1 (no extra DMA).
    def x_map(i, j):
        return (i, jnp.minimum(j, k_tiles - 1))

    def w0_map(i, j):
        return (jnp.minimum(j, k_tiles - 1), 0)

    def blk_map3(i, j):
        layer = jnp.maximum(jnp.minimum(j - k_tiles, num_layers - 1), 0)
        return (layer, 0, 0)

    def const2(i, j):
        return (0, 0)

    def out_map(i, j):
        return (i, 0)

    kernel = functools.partial(_mlp_deep_residual_kernel, num_layers, k_tiles)

    out = pl.pallas_call(
        kernel,
        out_shape=jax.ShapeDtypeStruct((b_pad, nc_pad), jnp.float32),
        grid_spec=pltpu.PrefetchScalarGridSpec(
            num_scalar_prefetch=0,
            grid=(b_pad // tm_eff, n_steps),
            in_specs=[
                pl.BlockSpec((tm_eff, tk_eff), x_map),                 # x tile
                pl.BlockSpec((tk_eff, hidden), w0_map),                # w0 K-tile
                pl.BlockSpec((1, hidden), const2),                     # b0
                pl.BlockSpec((1, hidden, hidden), blk_map3),           # one layer W
                pl.BlockSpec((1, 3, hidden), blk_map3),                # one layer b/g/b
                pl.BlockSpec((hidden, nc_pad), const2),                # wf (padded)
                pl.BlockSpec((1, nc_pad), const2),                     # bf (padded)
            ],
            out_specs=pl.BlockSpec((tm_eff, nc_pad), out_map),
            scratch_shapes=[pltpu.VMEM((tm_eff, hidden), jnp.float32)],
        ),
        compiler_params=pltpu.CompilerParams(
            dimension_semantics=("parallel", "arbitrary"),
            vmem_limit_bytes=vmem_limit),
    )(x_p, w0_p, b0, blk_w, blk_bgb, wf_p, bf_p)

    return out[:b, :num_classes]


def init_params(key, *, h, w, num_classes, num_layers, hidden_dim):
    """Deterministic init mimicking torch.nn.Linear default (U[-1/sqrt(fan_in), ...])."""
    in_dim = h * w * 3

    def linear(key, fan_in, fan_out):
        k1, k2 = jax.random.split(key)
        bound = 1.0 / jnp.sqrt(fan_in)
        wgt = jax.random.uniform(k1, (fan_in, fan_out), jnp.float32, -bound, bound)
        bias = jax.random.uniform(k2, (1, fan_out), jnp.float32, -bound, bound)
        return wgt, bias

    keys = jax.random.split(key, num_layers + 2)
    w0, b0 = linear(keys[0], in_dim, hidden_dim)
    blocks = []
    for i in range(num_layers):
        wi, bi = linear(keys[1 + i], hidden_dim, hidden_dim)
        blocks.append({
            "w": wi,
            "b": bi,
            "gamma": jnp.ones((1, hidden_dim), jnp.float32),
            "beta": jnp.zeros((1, hidden_dim), jnp.float32),
        })
    wf, bf = linear(keys[-1], hidden_dim, num_classes)
    return {"w0": w0, "b0": b0, "blocks": blocks, "wf": wf, "bf": bf}


def reference_forward(x, params):
    """Pure-JAX reference with the same mixed-precision policy (bf16 weights, f32 acc)."""
    h = jnp.dot(x.reshape(x.shape[0], -1).astype(jnp.bfloat16),
                params["w0"].astype(jnp.bfloat16),
                preferred_element_type=jnp.float32) + params["b0"]
    for blk in params["blocks"]:
        z = jnp.dot(h.astype(jnp.bfloat16), blk["w"].astype(jnp.bfloat16),
                    preferred_element_type=jnp.float32) + blk["b"]
        mean = jnp.mean(z, axis=-1, keepdims=True)
        var = jnp.mean((z - mean) ** 2, axis=-1, keepdims=True)
        zn = (z - mean) * jax.lax.rsqrt(var + LN_EPS) * blk["gamma"] + blk["beta"]
        h = jnp.maximum(zn + h, 0.0)
    return jnp.dot(h.astype(jnp.bfloat16), params["wf"].astype(jnp.bfloat16),
                   preferred_element_type=jnp.float32) + params["bf"]


if __name__ == "__main__":
    # Small shapes consistent with the module's forward: (b, 3, H, W)
    B, H, W = 2, 16, 16
    NUM_CLASSES, NUM_LAYERS, HIDDEN = 6, 3, 128

    key = jax.random.PRNGKey(0)
    kx, kp = jax.random.split(key)
    x = jax.random.normal(kx, (B, 3, H, W), jnp.float32)
    params = init_params(
        kp, h=H, w=W, num_classes=NUM_CLASSES,
        num_layers=NUM_LAYERS, hidden_dim=HIDDEN,
    )

    out = mlp_classifier_deep_residual(x, params, num_layers=NUM_LAYERS)
    out = jax.block_until_ready(out)

    ref = reference_forward(x, params)
    assert out.shape == (B, NUM_CLASSES)
    assert jnp.allclose(out, ref, atol=1e-2, rtol=1e-2), (out, ref)

    print("KERNEL_OK")
</pallas_src>

<mosaic_0001>
module attributes {stable_mosaic.version = 11 : i64} {
  func.func @_mlp_deep_residual_kernel(%arg0: i32, %arg1: i32, %arg2: memref<16x768xbf16, #tpu.memory_space<vmem>>, %arg3: memref<768x128xbf16, #tpu.memory_space<vmem>>, %arg4: memref<1x128xf32, #tpu.memory_space<vmem>>, %arg5: memref<1x128x128xbf16, #tpu.memory_space<vmem>>, %arg6: memref<1x3x128xf32, #tpu.memory_space<vmem>>, %arg7: memref<128x128xbf16, #tpu.memory_space<vmem>>, %arg8: memref<1x128xf32, #tpu.memory_space<vmem>>, %arg9: memref<16x128xf32, #tpu.memory_space<vmem>>, %arg10: memref<16x128xf32, #tpu.memory_space<vmem>>) attributes {dimension_semantics = [#tpu.dimension_semantics<parallel>, #tpu.dimension_semantics<arbitrary>], iteration_bounds = array<i64: 1, 5>, scalar_prefetch = 0 : i64, scratch_operands = 1 : i64, tpu.core_type = #tpu.core_type<tc>, window_params = [{transform_indices = @transform_0, window_bounds = array<i64: 16, 768>}, {transform_indices = @transform_1, window_bounds = array<i64: 768, 128>}, {pipeline_mode = #tpu.pipeline_mode<synchronous>, transform_indices = @transform_2, window_bounds = array<i64: 1, 128>}, {transform_indices = @transform_3, window_bounds = array<i64: 1, 128, 128>}, {transform_indices = @transform_4, window_bounds = array<i64: 1, 3, 128>}, {pipeline_mode = #tpu.pipeline_mode<synchronous>, transform_indices = @transform_5, window_bounds = array<i64: 128, 128>}, {pipeline_mode = #tpu.pipeline_mode<synchronous>, transform_indices = @transform_6, window_bounds = array<i64: 1, 128>}, {transform_indices = @transform_7, window_bounds = array<i64: 16, 128>}]} {
    %c0_i32 = arith.constant 0 : i32
    %0 = arith.cmpi eq, %arg1, %c0_i32 : i32
    %1 = arith.extui %0 : i1 to i32
    %c0_i32_0 = arith.constant 0 : i32
    %2 = arith.cmpi ne, %1, %c0_i32_0 : i32
    scf.if %2 {
      %cst = arith.constant 0.000000e+00 : f32
      %17 = vector.broadcast %cst : f32 to vector<16x128xf32>
      %c0 = arith.constant 0 : index
      %c0_8 = arith.constant 0 : index
      %18 = vector.load %arg10[%c0, %c0_8] : memref<16x128xf32, #tpu.memory_space<vmem>>, vector<16x128xf32>
      tpu.vector_store %arg10[%c0, %c0_8], %17 {strides = array<i32>} : memref<16x128xf32, #tpu.memory_space<vmem>>, vector<16x128xf32>,
    } else {
    }
    %c1_i32 = arith.constant 1 : i32
    %3 = arith.cmpi slt, %arg1, %c1_i32 : i32
    %4 = arith.extui %3 : i1 to i32
    %c0_i32_1 = arith.constant 0 : i32
    %5 = arith.cmpi ne, %4, %c0_i32_1 : i32
    scf.if %5 {
      %c0 = arith.constant 0 : index
      %c0_8 = arith.constant 0 : index
      %17 = vector.load %arg10[%c0, %c0_8] : memref<16x128xf32, #tpu.memory_space<vmem>>, vector<16x128xf32>
      %c0_9 = arith.constant 0 : index
      %c0_10 = arith.constant 0 : index
      %18 = vector.load %arg2[%c0_9, %c0_10] : memref<16x768xbf16, #tpu.memory_space<vmem>>, vector<16x768xbf16>
      %c0_11 = arith.constant 0 : index
      %c0_12 = arith.constant 0 : index
      %19 = vector.load %arg3[%c0_11, %c0_12] : memref<768x128xbf16, #tpu.memory_space<vmem>>, vector<768x128xbf16>
      %cst = arith.constant dense<0.000000e+00> : vector<16x128xf32>
      %20 = tpu.matmul %18, %19, %cst {dimension_numbers = #tpu.dot_dimension_numbers<[1], [0], [0], [1], [0, 0, 1, 1], [], []>} : vector<16x768xbf16>, vector<768x128xbf16>, vector<16x128xf32> -> vector<16x128xf32>
      %21 = arith.addf %17, %20 : vector<16x128xf32>
      %c0_13 = arith.constant 0 : index
      %c0_14 = arith.constant 0 : index
      %22 = vector.load %arg10[%c0_13, %c0_14] : memref<16x128xf32, #tpu.memory_space<vmem>>, vector<16x128xf32>
      tpu.vector_store %arg10[%c0_13, %c0_14], %21 {strides = array<i32>} : memref<16x128xf32, #tpu.memory_space<vmem>>, vector<16x128xf32>,
    } else {
    }
    %c0_i32_2 = arith.constant 0 : i32
    %6 = arith.cmpi eq, %arg1, %c0_i32_2 : i32
    %7 = arith.extui %6 : i1 to i32
    %c0_i32_3 = arith.constant 0 : i32
    %8 = arith.cmpi ne, %7, %c0_i32_3 : i32
    scf.if %8 {
      %c0 = arith.constant 0 : index
      %c0_8 = arith.constant 0 : index
      %17 = vector.load %arg10[%c0, %c0_8] : memref<16x128xf32, #tpu.memory_space<vmem>>, vector<16x128xf32>
      %c0_9 = arith.constant 0 : index
      %c0_10 = arith.constant 0 : index
      %18 = vector.load %arg4[%c0_9, %c0_10] : memref<1x128xf32, #tpu.memory_space<vmem>>, vector<1x128xf32>
      %19 = vector.broadcast %18 : vector<1x128xf32> to vector<16x128xf32>
      %20 = arith.addf %17, %19 : vector<16x128xf32>
      %c0_11 = arith.constant 0 : index
      %c0_12 = arith.constant 0 : index
      %21 = vector.load %arg10[%c0_11, %c0_12] : memref<16x128xf32, #tpu.memory_space<vmem>>, vector<16x128xf32>
      tpu.vector_store %arg10[%c0_11, %c0_12], %20 {strides = array<i32>} : memref<16x128xf32, #tpu.memory_space<vmem>>, vector<16x128xf32>,
    } else {
    }
    %c1_i32_4 = arith.constant 1 : i32
    %9 = arith.cmpi sge, %arg1, %c1_i32_4 : i32
    %c4_i32 = arith.constant 4 : i32
    %10 = arith.cmpi slt, %arg1, %c4_i32 : i32
    %11 = arith.andi %9, %10 : i1
    %12 = arith.extui %11 : i1 to i32
    %c0_i32_5 = arith.constant 0 : i32
    %13 = arith.cmpi ne, %12, %c0_i32_5 : i32
    scf.if %13 {
      %c0 = arith.constant 0 : index
      %c0_8 = arith.constant 0 : index
      %17 = vector.load %arg10[%c0, %c0_8] : memref<16x128xf32, #tpu.memory_space<vmem>>, vector<16x128xf32>
      %c0_9 = arith.constant 0 : index
      %c0_10 = arith.constant 0 : index
      %c0_11 = arith.constant 0 : index
      %18 = vector.load %arg5[%c0_9, %c0_10, %c0_11] : memref<1x128x128xbf16, #tpu.memory_space<vmem>>, vector<1x128x128xbf16>
      %19 = vector.shape_cast %18 : vector<1x128x128xbf16> to vector<128x128xbf16>
      %c0_12 = arith.constant 0 : index
      %c0_13 = arith.constant 0 : index
      %c0_14 = arith.constant 0 : index
      %20 = vector.load %arg6[%c0_12, %c0_13, %c0_14] : memref<1x3x128xf32, #tpu.memory_space<vmem>>, vector<1x3x128xf32>
      %21 = vector.shape_cast %20 : vector<1x3x128xf32> to vector<3x128xf32>
      %22 = vector.extract_strided_slice %21 {offsets = [0, 0], sizes = [1, 128], strides = [1, 1]} : vector<3x128xf32> to vector<1x128xf32>
      %23 = vector.extract_strided_slice %21 {offsets = [1, 0], sizes = [1, 128], strides = [1, 1]} : vector<3x128xf32> to vector<1x128xf32>
      %24 = vector.extract_strided_slice %21 {offsets = [2, 0], sizes = [1, 128], strides = [1, 1]} : vector<3x128xf32> to vector<1x128xf32>
      %25 = arith.truncf %17 : vector<16x128xf32> to vector<16x128xbf16>
      %cst = arith.constant dense<0.000000e+00> : vector<16x128xf32>
      %26 = tpu.matmul %25, %19, %cst {dimension_numbers = #tpu.dot_dimension_numbers<[1], [0], [0], [1], [0, 0, 1, 1], [], []>} : vector<16x128xbf16>, vector<128x128xbf16>, vector<16x128xf32> -> vector<16x128xf32>
      %27 = vector.broadcast %22 : vector<1x128xf32> to vector<16x128xf32>
      %28 = arith.addf %26, %27 : vector<16x128xf32>
      %cst_15 = arith.constant dense<0.000000e+00> : vector<16xf32>
      %29 = vector.multi_reduction <add>, %28, %cst_15 [1] : vector<16x128xf32> to vector<16xf32>
      %30 = vector.shape_cast %29 : vector<16xf32> to vector<16x1xf32>
      %cst_16 = arith.constant 7.812500e-03 : f32
      %31 = vector.broadcast %cst_16 : f32 to vector<16x1xf32>
      %32 = arith.mulf %30, %31 : vector<16x1xf32>
      %33 = vector.broadcast %32 : vector<16x1xf32> to vector<16x128xf32>
      %34 = arith.subf %28, %33 : vector<16x128xf32>
      %35 = arith.mulf %34, %34 : vector<16x128xf32>
      %cst_17 = arith.constant dense<0.000000e+00> : vector<16xf32>
      %36 = vector.multi_reduction <add>, %35, %cst_17 [1] : vector<16x128xf32> to vector<16xf32>
      %37 = vector.shape_cast %36 : vector<16xf32> to vector<16x1xf32>
      %cst_18 = arith.constant 7.812500e-03 : f32
      %38 = vector.broadcast %cst_18 : f32 to vector<16x1xf32>
      %39 = arith.mulf %37, %38 : vector<16x1xf32>
      %cst_19 = arith.constant 9.99999974E-6 : f32
      %40 = vector.broadcast %cst_19 : f32 to vector<16x1xf32>
      %41 = arith.addf %39, %40 : vector<16x1xf32>
      %42 = math.rsqrt %41 : vector<16x1xf32>
      %43 = vector.broadcast %23 : vector<1x128xf32> to vector<16x128xf32>
      %44 = vector.broadcast %42 : vector<16x1xf32> to vector<16x128xf32>
      %45 = arith.mulf %43, %44 : vector<16x128xf32>
      %46 = arith.mulf %34, %45 : vector<16x128xf32>
      %47 = vector.broadcast %24 : vector<1x128xf32> to vector<16x128xf32>
      %48 = arith.addf %46, %47 : vector<16x128xf32>
      %49 = arith.addf %48, %17 : vector<16x128xf32>
      %cst_20 = arith.constant 0.000000e+00 : f32
      %50 = vector.broadcast %cst_20 : f32 to vector<16x128xf32>
      %51 = arith.maximumf %49, %50 : vector<16x128xf32>
      %c0_21 = arith.constant 0 : index
      %c0_22 = arith.constant 0 : index
      %52 = vector.load %arg10[%c0_21, %c0_22] : memref<16x128xf32, #tpu.memory_space<vmem>>, vector<16x128xf32>
      tpu.vector_store %arg10[%c0_21, %c0_22], %51 {strides = array<i32>} : memref<16x128xf32, #tpu.memory_space<vmem>>, vector<16x128xf32>,
    } else {
    }
    %c4_i32_6 = arith.constant 4 : i32
    %14 = arith.cmpi eq, %arg1, %c4_i32_6 : i32
    %15 = arith.extui %14 : i1 to i32
    %c0_i32_7 = arith.constant 0 : i32
    %16 = arith.cmpi ne, %15, %c0_i32_7 : i32
    scf.if %16 {
      %c0 = arith.constant 0 : index
      %c0_8 = arith.constant 0 : index
      %17 = vector.load %arg10[%c0, %c0_8] : memref<16x128xf32, #tpu.memory_space<vmem>>, vector<16x128xf32>
      %18 = arith.truncf %17 : vector<16x128xf32> to vector<16x128xbf16>
      %c0_9 = arith.constant 0 : index
      %c0_10 = arith.constant 0 : index
      %19 = vector.load %arg7[%c0_9, %c0_10] : memref<128x128xbf16, #tpu.memory_space<vmem>>, vector<128x128xbf16>
      %cst = arith.constant dense<0.000000e+00> : vector<16x128xf32>
      %20 = tpu.matmul %18, %19, %cst {dimension_numbers = #tpu.dot_dimension_numbers<[1], [0], [0], [1], [0, 0, 1, 1], [], []>} : vector<16x128xbf16>, vector<128x128xbf16>, vector<16x128xf32> -> vector<16x128xf32>
      %c0_11 = arith.constant 0 : index
      %c0_12 = arith.constant 0 : index
      %21 = vector.load %arg8[%c0_11, %c0_12] : memref<1x128xf32, #tpu.memory_space<vmem>>, vector<1x128xf32>
      %22 = vector.broadcast %21 : vector<1x128xf32> to vector<16x128xf32>
      %23 = arith.addf %20, %22 : vector<16x128xf32>
      %c0_13 = arith.constant 0 : index
      %c0_14 = arith.constant 0 : index
      %24 = vector.load %arg9[%c0_13, %c0_14] : memref<16x128xf32, #tpu.memory_space<vmem>>, vector<16x128xf32>
      tpu.vector_store %arg9[%c0_13, %c0_14], %23 {strides = array<i32>} : memref<16x128xf32, #tpu.memory_space<vmem>>, vector<16x128xf32>,
    } else {
    }
    return
  }
  func.func @transform_0(%arg0: i32, %arg1: i32) -> (i32, i32) {
    %c0_i32 = arith.constant 0 : i32
    %0 = arith.minsi %arg1, %c0_i32 : i32
    %c0_i32_0 = arith.constant 0 : i32
    return %arg0, %0 : i32, i32
  }
  func.func @transform_1(%arg0: i32, %arg1: i32) -> (i32, i32) {
    %c0_i32 = arith.constant 0 : i32
    %0 = arith.minsi %arg1, %c0_i32 : i32
    %c0_i32_0 = arith.constant 0 : i32
    %c0_i32_1 = arith.constant 0 : i32
    return %0, %c0_i32_0 : i32, i32
  }
  func.func @transform_2(%arg0: i32, %arg1: i32) -> (i32, i32) {
    %c0_i32 = arith.constant 0 : i32
    %c0_i32_0 = arith.constant 0 : i32
    %c0_i32_1 = arith.constant 0 : i32
    return %c0_i32, %c0_i32_0 : i32, i32
  }
  func.func @transform_3(%arg0: i32, %arg1: i32) -> (i32, i32, i32) {
    %c1_i32 = arith.constant 1 : i32
    %0 = arith.subi %arg1, %c1_i32 : i32
    %c2_i32 = arith.constant 2 : i32
    %1 = arith.minsi %0, %c2_i32 : i32
    %c0_i32 = arith.constant 0 : i32
    %2 = arith.maxsi %1, %c0_i32 : i32
    %c0_i32_0 = arith.constant 0 : i32
    %c0_i32_1 = arith.constant 0 : i32
    %c0_i32_2 = arith.constant 0 : i32
    return %2, %c0_i32_0, %c0_i32_1 : i32, i32, i32
  }
  func.func @transform_4(%arg0: i32, %arg1: i32) -> (i32, i32, i32) {
    %c1_i32 = arith.constant 1 : i32
    %0 = arith.subi %arg1, %c1_i32 : i32
    %c2_i32 = arith.constant 2 : i32
    %1 = arith.minsi %0, %c2_i32 : i32
    %c0_i32 = arith.constant 0 : i32
    %2 = arith.maxsi %1, %c0_i32 : i32
    %c0_i32_0 = arith.constant 0 : i32
    %c0_i32_1 = arith.constant 0 : i32
    %c0_i32_2 = arith.constant 0 : i32
    return %2, %c0_i32_0, %c0_i32_1 : i32, i32, i32
  }
  func.func @transform_5(%arg0: i32, %arg1: i32) -> (i32, i32) {
    %c0_i32 = arith.constant 0 : i32
    %c0_i32_0 = arith.constant 0 : i32
    %c0_i32_1 = arith.constant 0 : i32
    return %c0_i32, %c0_i32_0 : i32, i32
  }
  func.func @transform_6(%arg0: i32, %arg1: i32) -> (i32, i32) {
    %c0_i32 = arith.constant 0 : i32
    %c0_i32_0 = arith.constant 0 : i32
    %c0_i32_1 = arith.constant 0 : i32
    return %c0_i32, %c0_i32_0 : i32, i32
  }
  func.func @transform_7(%arg0: i32, %arg1: i32) -> (i32, i32) {
    %c0_i32 = arith.constant 0 : i32
    %c0_i32_0 = arith.constant 0 : i32
    return %arg0, %c0_i32 : i32, i32
  }
}

</mosaic_0001>

<llo_original>
// kernel: tpu_custom_call.1
$region0: #{tpu_custom_call.1}
  #allocation0 [shape = 'u32[]', space=smem, size = 0x4, offset = 0x4, fixed_abs, tag = 'smem constant byte address 0x4 - core index']
  #allocation1 [shape = 'u32[72,128]{1,0:T(1,128)}', space=vmem, size = 0x9000, scoped, tag = 'internal scratch']
  #allocation2 [shape = 'f32[16,128]{1,0:T(8,128)}', space=vmem, size = 0x2000, scoped, tag = 'scratch operand']
  %s0 = inlined_call_operand.hbm [shape: bf16[16,768], index: 0, kind: input, shape index: {}]
  %s1 = inlined_call_operand.hbm [shape: bf16[768,128], index: 1, kind: input, shape index: {}]
  %s2 = inlined_call_operand.vmem [shape: f32[1,128], index: 2, kind: input, shape index: {}]
  %s3 = inlined_call_operand.hbm [shape: bf16[3,128,128], index: 3, kind: input, shape index: {}]
  %s4 = inlined_call_operand.hbm [shape: f32[3,3,128], index: 4, kind: input, shape index: {}]
  %s5 = inlined_call_operand.hbm [shape: bf16[128,128], index: 5, kind: input, shape index: {}]
  %s6 = inlined_call_operand.vmem [shape: f32[1,128], index: 6, kind: input, shape index: {}]
  %s7 = inlined_call_operand.hbm [shape: f32[16,128], index: 7, kind: output, shape index: {}]
  %s8 = sld [smem:[#allocation0]]
  $region101: #{tpu_custom_call.1} parent=0
    _
  %s10 = ssub.s32 1, %s8
  %s11 = scalar_select 0, %s10, %s8
  $region1: #{tpu_custom_call.1} parent=0
    #allocation3 [shape = 'u8[49152]{0}', space=vmem, size = 0xc000, scoped, tag = 'input window, operand 0']
    #allocation4 [shape = 's32[2]{0}', space=sflag, size = 0x8, scoped, tag = 'scoped memory for tpu_custom_call.1']
    #allocation5 [shape = 's32[2]{0}', space=sflag, size = 0x8, scoped, tag = 'scoped memory for tpu_custom_call.1']
    #allocation6 [shape = 'u8[393216]{0}', space=vmem, size = 0x60000, scoped, tag = 'input window, operand 1']
    #allocation7 [shape = 's32[2]{0}', space=sflag, size = 0x8, scoped, tag = 'scoped memory for tpu_custom_call.1']
    #allocation8 [shape = 'u8[65536]{0}', space=vmem, size = 0x10000, scoped, tag = 'input window, operand 3']
    #allocation9 [shape = 'u8[4096]{0}', space=vmem, size = 0x1000, scoped, tag = 'input window, operand 4']
    #allocation10 [shape = 's32[2]{0}', space=sflag, size = 0x8, scoped, tag = 'scoped memory for tpu_custom_call.1']
    #allocation11 [shape = 'u8[32768]{0}', space=vmem, size = 0x8000, scoped, tag = 'input window, operand 5, single buffered']
    #allocation12 [shape = 'u8[8192]{0}', space=vmem, size = 0x2000, scoped, tag = 'output window, operand 0, single buffered']
    %12 = vsyncpa [#allocation4], 0
    %s13 = scalar_lea.sflag [#allocation4], 1
    %14 = vsyncpa %s13, 0
    %15 = vsyncpa [#allocation7], 0
    %s16 = scalar_lea.sflag [#allocation7], 1
    %17 = vsyncpa %s16, 0
    %18 = vsyncpa [#allocation10], 0
    %s19 = scalar_lea.sflag [#allocation10], 1
    %20 = vsyncpa %s19, 0
    %21 = vsyncpa [#allocation5], 0
    loop: start=0, step=1, limit=7
    $region2: #{tpu_custom_call.1} parent=1 // loop_pre_header
      _
    $region3: #{tpu_custom_call.1} parent=1 // loop_header
      %s23 = sphi 0, %s27
      %p24 = scmp.ge.s32.totalorder %s23, 7
      %s30 = sphi 0, %s42
      %s31 = sphi 0, %s38
      %s32 = sphi 0, %s30
      %s33 = sphi 0, %s31
      %s34 = sphi 0, %s32
      %s35 = sphi 0, %s33
      %s51 = sphi 0, %s53
      %s54 = sphi 0, %s51
      %s55 = sphi 0, %s54
      %s71 = sphi 0, %s55
      %s81 = sphi 0, %s83
      %s84 = sphi 0, %s81
      %s85 = sphi 0, %s84
      %s101 = sphi 0, %s85
      %s105 = sphi 0, %s105
      %s107 = sphi 0, %s105
      %s108 = sphi 0, %s107
      %s122 = sphi 0, %s108
      %s138 = sphi 0, %s140
      %s141 = sphi 0, %s138
      %s142 = sphi 0, %s141
      %s158 = sphi 0, %s142
      %s174 = sphi 0, %s176
      %s177 = sphi 0, %s174
      %s178 = sphi 0, %s177
      %s194 = sphi 0, %s178
      %s198 = sphi 0, %s198
      %s200 = sphi 0, %s198
      %s201 = sphi 0, %s200
      %s215 = sphi 0, %s201
      %s219 = sphi 0, %s219
      %s221 = sphi 0, %s219
      %s222 = sphi 0, %s221
      %s236 = sphi 0, %s222
      %s242 = sphi 0, %s244
      %s245 = sphi 0, %s242
      %s246 = sphi 0, %s245
      %s262 = sphi 0, %s246
    $region4: #{tpu_custom_call.1} parent=1 // loop_header_branch
      %26 = sbr.rel (%p24) target = $region8
    $region5: #{tpu_custom_call.1} parent=1 // loop_body
      %s28 = ssub.s32 %s23, 1
      %s29 = ssub.s32 %s23, 2
      %s36 = sadd.s32 1, %s31
      %p37 = scmp.ge.s32.totalorder %s36, 5
      %s38 = scalar_select %p37, 0, %s36
      %s39 = sadd.s32 1, %s30
      %s40 = scalar_select %p37, %s39, %s30
      %p41 = scmp.ge.s32.totalorder %s40, 1
      %s42 = scalar_select %p41, 0, %s40
      %p43 = scmp.lt.s32.totalorder %s31, 0
      %s44 = scalar_select %p43, %s31, 0
      %p45 = scmp.lt.s32.totalorder %s38, 0
      %s46 = scalar_select %p45, %s38, 0
      %s47 = ssub.s32 %s30, %s42
      %s48 = ssub.s32 %s44, %s46
      %s49 = sor.u32 %s47, %s48
      %p50 = scmp.eq.s32.totalorder %s49, 0
      %s52 = sadd.s32 %s51, 1
      %s53 = scalar_select %p50, %s51, %s52
      %p56 = pneg %p50
      %p57 = scmp.eq.s32.totalorder %s23, 4
      %p58 = por %p56, %p57
      %p59 = scmp.ne.s32.totalorder %s51, %s54
      %p60 = scmp.eq.s32.totalorder %s23, 0
      %p61 = por %p59, %p60
      %p62 = scmp.ne.s32.totalorder %s51, %s54
      %p63 = scmp.eq.s32.totalorder %s28, 4
      %p64 = por %p62, %p63
      %p65 = scmp.ne.s32.totalorder %s54, %s55
      %p66 = scmp.eq.s32.totalorder %s28, 0
      %p67 = por %p65, %p66
      %p68 = scmp.ne.s32.totalorder %s54, %s55
      %p69 = scmp.eq.s32.totalorder %s29, 4
      %p70 = por %p68, %p69
      %p72 = scmp.ne.s32.totalorder %s55, %s71
      %p73 = scmp.eq.s32.totalorder %s29, 0
      %p74 = por %p72, %p73
      %p75 = scmp.lt.s32.totalorder %s31, 0
      %s76 = scalar_select %p75, %s31, 0
      %p77 = scmp.lt.s32.totalorder %s38, 0
      %s78 = scalar_select %p77, %s38, 0
      %s79 = ssub.s32 %s76, %s78
      %p80 = scmp.eq.s32.totalorder %s79, 0
      %s82 = sadd.s32 %s81, 1
      %s83 = scalar_select %p80, %s81, %s82
      %p86 = pneg %p80
      %p87 = scmp.eq.s32.totalorder %s23, 4
      %p88 = por %p86, %p87
      %p89 = scmp.ne.s32.totalorder %s81, %s84
      %p90 = scmp.eq.s32.totalorder %s23, 0
      %p91 = por %p89, %p90
      %p92 = scmp.ne.s32.totalorder %s81, %s84
      %p93 = scmp.eq.s32.totalorder %s28, 4
      %p94 = por %p92, %p93
      %p95 = scmp.ne.s32.totalorder %s84, %s85
      %p96 = scmp.eq.s32.totalorder %s28, 0
      %p97 = por %p95, %p96
      %p98 = scmp.ne.s32.totalorder %s84, %s85
      %p99 = scmp.eq.s32.totalorder %s29, 4
      %p100 = por %p98, %p99
      %p102 = scmp.ne.s32.totalorder %s85, %s101
      %p103 = scmp.eq.s32.totalorder %s29, 0
      %p104 = por %p102, %p103
      %s106 = sadd.s32 %s105, 1
      %p109 = scmp.eq.s32.totalorder %s23, 4
      %p110 = scmp.ne.s32.totalorder %s105, %s107
      %p111 = scmp.eq.s32.totalorder %s23, 0
      %p112 = por %p110, %p111
      %p113 = scmp.ne.s32.totalorder %s105, %s107
      %p114 = scmp.eq.s32.totalorder %s28, 4
      %p115 = por %p113, %p114
      %p116 = scmp.ne.s32.totalorder %s107, %s108
      %p117 = scmp.eq.s32.totalorder %s28, 0
      %p118 = por %p116, %p117
      %p119 = scmp.ne.s32.totalorder %s107, %s108
      %p120 = scmp.eq.s32.totalorder %s29, 4
      %p121 = por %p119, %p120
      %p123 = scmp.ne.s32.totalorder %s108, %s122
      %p124 = scmp.eq.s32.totalorder %s29, 0
      %p125 = por %p123, %p124
      %s126 = ssub.s32 %s31, 1
      %p127 = scmp.lt.s32.totalorder %s126, 2
      %s128 = scalar_select %p127, %s126, 2
      %p129 = scmp.gt.s32.totalorder %s128, 0
      %s130 = scalar_select %p129, %s128, 0
      %s131 = ssub.s32 %s38, 1
      %p132 = scmp.lt.s32.totalorder %s131, 2
      %s133 = scalar_select %p132, %s131, 2
      %p134 = scmp.gt.s32.totalorder %s133, 0
      %s135 = scalar_select %p134, %s133, 0
      %s136 = ssub.s32 %s130, %s135
      %p137 = scmp.eq.s32.totalorder %s136, 0
      %s139 = sadd.s32 %s138, 1
      %s140 = scalar_select %p137, %s138, %s139
      %p143 = pneg %p137
      %p144 = scmp.eq.s32.totalorder %s23, 4
      %p145 = por %p143, %p144
      %p146 = scmp.ne.s32.totalorder %s138, %s141
      %p147 = scmp.eq.s32.totalorder %s23, 0
      %p148 = por %p146, %p147
      %p149 = scmp.ne.s32.totalorder %s138, %s141
      %p150 = scmp.eq.s32.totalorder %s28, 4
      %p151 = por %p149, %p150
      %p152 = scmp.ne.s32.totalorder %s141, %s142
      %p153 = scmp.eq.s32.totalorder %s28, 0
      %p154 = por %p152, %p153
      %p155 = scmp.ne.s32.totalorder %s141, %s142
      %p156 = scmp.eq.s32.totalorder %s29, 4
      %p157 = por %p155, %p156
      %p159 = scmp.ne.s32.totalorder %s142, %s158
      %p160 = scmp.eq.s32.totalorder %s29, 0
      %p161 = por %p159, %p160
      %s162 = ssub.s32 %s31, 1
      %p163 = scmp.lt.s32.totalorder %s162, 2
      %s164 = scalar_select %p163, %s162, 2
      %p165 = scmp.gt.s32.totalorder %s164, 0
      %s166 = scalar_select %p165, %s164, 0
      %s167 = ssub.s32 %s38, 1
      %p168 = scmp.lt.s32.totalorder %s167, 2
      %s169 = scalar_select %p168, %s167, 2
      %p170 = scmp.gt.s32.totalorder %s169, 0
      %s171 = scalar_select %p170, %s169, 0
      %s172 = ssub.s32 %s166, %s171
      %p173 = scmp.eq.s32.totalorder %s172, 0
      %s175 = sadd.s32 %s174, 1
      %s176 = scalar_select %p173, %s174, %s175
      %p179 = pneg %p173
      %p180 = scmp.eq.s32.totalorder %s23, 4
      %p181 = por %p179, %p180
      %p182 = scmp.ne.s32.totalorder %s174, %s177
      %p183 = scmp.eq.s32.totalorder %s23, 0
      %p184 = por %p182, %p183
      %p185 = scmp.ne.s32.totalorder %s174, %s177
      %p186 = scmp.eq.s32.totalorder %s28, 4
      %p187 = por %p185, %p186
      %p188 = scmp.ne.s32.totalorder %s177, %s178
      %p189 = scmp.eq.s32.totalorder %s28, 0
      %p190 = por %p188, %p189
      %p191 = scmp.ne.s32.totalorder %s177, %s178
      %p192 = scmp.eq.s32.totalorder %s29, 4
      %p193 = por %p191, %p192
      %p195 = scmp.ne.s32.totalorder %s178, %s194
      %p196 = scmp.eq.s32.totalorder %s29, 0
      %p197 = por %p195, %p196
      %s199 = sadd.s32 %s198, 1
      %p202 = scmp.eq.s32.totalorder %s23, 4
      %p203 = scmp.ne.s32.totalorder %s198, %s200
      %p204 = scmp.eq.s32.totalorder %s23, 0
      %p205 = por %p203, %p204
      %p206 = scmp.ne.s32.totalorder %s198, %s200
      %p207 = scmp.eq.s32.totalorder %s28, 4
      %p208 = por %p206, %p207
      %p209 = scmp.ne.s32.totalorder %s200, %s201
      %p210 = scmp.eq.s32.totalorder %s28, 0
      %p211 = por %p209, %p210
      %p212 = scmp.ne.s32.totalorder %s200, %s201
      %p213 = scmp.eq.s32.totalorder %s29, 4
      %p214 = por %p212, %p213
      %p216 = scmp.ne.s32.totalorder %s201, %s215
      %p217 = scmp.eq.s32.totalorder %s29, 0
      %p218 = por %p216, %p217
      %s220 = sadd.s32 %s219, 1
      %p223 = scmp.eq.s32.totalorder %s23, 4
      %p224 = scmp.ne.s32.totalorder %s219, %s221
      %p225 = scmp.eq.s32.totalorder %s23, 0
      %p226 = por %p224, %p225
      %p227 = scmp.ne.s32.totalorder %s219, %s221
      %p228 = scmp.eq.s32.totalorder %s28, 4
      %p229 = por %p227, %p228
      %p230 = scmp.ne.s32.totalorder %s221, %s222
      %p231 = scmp.eq.s32.totalorder %s28, 0
      %p232 = por %p230, %p231
      %p233 = scmp.ne.s32.totalorder %s221, %s222
      %p234 = scmp.eq.s32.totalorder %s29, 4
      %p235 = por %p233, %p234
      %p237 = scmp.ne.s32.totalorder %s222, %s236
      %p238 = scmp.eq.s32.totalorder %s29, 0
      %p239 = por %p237, %p238
      %s240 = ssub.s32 %s30, %s42
      %p241 = scmp.eq.s32.totalorder %s240, 0
      %s243 = sadd.s32 %s242, 1
      %s244 = scalar_select %p241, %s242, %s243
      %p247 = pneg %p241
      %p248 = scmp.eq.s32.totalorder %s23, 4
      %p249 = por %p247, %p248
      %p250 = scmp.ne.s32.totalorder %s242, %s245
      %p251 = scmp.eq.s32.totalorder %s23, 0
      %p252 = por %p250, %p251
      %p253 = scmp.ne.s32.totalorder %s242, %s245
      %p254 = scmp.eq.s32.totalorder %s28, 4
      %p255 = por %p253, %p254
      %p256 = scmp.ne.s32.totalorder %s245, %s246
      %p257 = scmp.eq.s32.totalorder %s28, 0
      %p258 = por %p256, %p257
      %p259 = scmp.ne.s32.totalorder %s245, %s246
      %p260 = scmp.eq.s32.totalorder %s29, 4
      %p261 = por %p259, %p260
      %p263 = scmp.ne.s32.totalorder %s246, %s262
      %p264 = scmp.eq.s32.totalorder %s29, 0
      %p265 = por %p263, %p264
      %p266 = scmp.le.s32.totalorder 1, %s23
      %p267 = scmp.lt.s32.totalorder %s23, 6
      %p268 = pnand %p266, %p267
      %p269 = pneg %p268
      // Predicated region
      $region9: #{tpu_custom_call.1} parent=5 // pred_check
        _
      $region10: #{tpu_custom_call.1} parent=5 // pred_check_branch
        %271 = sbr.rel (%p268) target = $region12
      $region11: #{tpu_custom_call.1} parent=5 // pred_region
        %s272 = ssub.s32 %s23, 1
        // Predicated region
        $region13: #{tpu_custom_call.1} parent=11 // pred_check
          %p273 = pneg %p118
        $region14: #{tpu_custom_call.1} parent=11 // pred_check_branch
          %275 = sbr.rel (%p273) target = $region16
        $region15: #{tpu_custom_call.1} parent=11 // pred_region
          _
        $region16: #{tpu_custom_call.1} parent=11 // pred_fallthru
          _
        // Predicated region
        $region17: #{tpu_custom_call.1} parent=11 // pred_check
          %p276 = pneg %p211
        $region18: #{tpu_custom_call.1} parent=11 // pred_check_branch
          %278 = sbr.rel (%p276) target = $region20
        $region19: #{tpu_custom_call.1} parent=11 // pred_region
          %280 = vsyncadd [#allocation10], 0
          %s281 = sshll.u32 %s5, 4
          %s282 = int_to_ptr.hbm [resolvable:$true] %s281
          %s283 = sshll.u32 [#allocation11], 4
          %s284 = int_to_ptr.vmem [resolvable:$true] %s283
          %289 = dma.hbm_to_vmem [thread:$0]  %s282, 1024, %s284, [#allocation10], 64, 64, 4
        $region20: #{tpu_custom_call.1} parent=11 // pred_fallthru
          _
        // Predicated region
        $region21: #{tpu_custom_call.1} parent=11 // pred_check
          %p290 = pneg %p232
        $region22: #{tpu_custom_call.1} parent=11 // pred_check_branch
          %292 = sbr.rel (%p290) target = $region24
        $region23: #{tpu_custom_call.1} parent=11 // pred_region
          _
        $region24: #{tpu_custom_call.1} parent=11 // pred_fallthru
          _
      $region12: #{tpu_custom_call.1} parent=5 // pred_fallthru
        _
      %p293 = scmp.lt.s32.totalorder %s23, 5
      // Predicated region
      $region25: #{tpu_custom_call.1} parent=5 // pred_check
        %p294 = pneg %p293
      $region26: #{tpu_custom_call.1} parent=5 // pred_check_branch
        %296 = sbr.rel (%p294) target = $region28
      $region27: #{tpu_custom_call.1} parent=5 // pred_region
        // Predicated region
        $region29: #{tpu_custom_call.1} parent=27 // pred_check
          %p297 = pneg %p61
        $region30: #{tpu_custom_call.1} parent=27 // pred_check_branch
          %299 = sbr.rel (%p297) target = $region32
        $region31: #{tpu_custom_call.1} parent=27 // pred_region
          %s300 = sand.u32 %s51, 1
          %s301 = scalar_lea.sflag [#allocation4], %s300
          %s302 = sand.u32 %s51, 1
          %s303 = smul.addr %s302, 48
          %s304 = scalar_lea.vmem [#allocation3], %s303
          %p305 = scmp.lt.s32.totalorder %s31, 0
          %s306 = scalar_select %p305, %s31, 0
          %s307 = smul.u32 2, %s30
          %s308 = smul.u32 6, %s306
          %310 = vsyncadd %s301, 0
          %s311 = smul.addr %s307, 6
          %s312 = sadd.s32 %s308, %s311
          %s313 = smul.addr %s312, 4
          %s314 = scalar_lea.hbm %s0, %s313
          %s315 = sshll.u32 %s314, 4
          %s316 = int_to_ptr.hbm [resolvable:$true] %s315
          %s317 = sshll.u32 %s304, 4
          %s318 = int_to_ptr.vmem [resolvable:$true] %s317
          %323 = dma.hbm_to_vmem [thread:$0]  %s316, 768, %s318, %s301, 384, 384, 24
        $region32: #{tpu_custom_call.1} parent=27 // pred_fallthru
          _
        // Predicated region
        $region33: #{tpu_custom_call.1} parent=27 // pred_check
          %p324 = pneg %p91
        $region34: #{tpu_custom_call.1} parent=27 // pred_check_branch
          %326 = sbr.rel (%p324) target = $region36
        $region35: #{tpu_custom_call.1} parent=27 // pred_region
          %s327 = sand.u32 %s23, 1
          %s328 = scalar_lea.sflag [#allocation7], %s327
          %s329 = sand.u32 %s81, 1
          %s330 = smul.addr %s329, 384
          %s331 = scalar_lea.vmem [#allocation6], %s330
          %p332 = scmp.lt.s32.totalorder %s31, 0
          %s333 = scalar_select %p332, %s31, 0
          %s334 = smul.u32 96, %s333
          %336 = vsyncadd %s328, 0
          %s337 = smul.addr %s334, 4
          %s338 = scalar_lea.hbm %s1, %s337
          %s339 = sshll.u32 %s338, 4
          %s340 = int_to_ptr.hbm [resolvable:$true] %s339
          %s341 = sshll.u32 %s331, 4
          %s342 = int_to_ptr.vmem [resolvable:$true] %s341
          %347 = dma.hbm_to_vmem [thread:$0]  %s340, 6144, %s342, %s328, 64, 64, 4
        $region36: #{tpu_custom_call.1} parent=27 // pred_fallthru
          _
        // Predicated region
        $region37: #{tpu_custom_call.1} parent=27 // pred_check
          %p348 = pneg %p148
        $region38: #{tpu_custom_call.1} parent=27 // pred_check_branch
          %350 = sbr.rel (%p348) target = $region40
        $region39: #{tpu_custom_call.1} parent=27 // pred_region
          %s351 = sand.u32 %s23, 1
          %s352 = scalar_lea.sflag [#allocation7], %s351
          %s353 = sand.u32 %s138, 1
          %s354 = smul.addr %s353, 64
          %s355 = scalar_lea.vmem [#allocation8], %s354
          %s356 = ssub.s32 %s31, 1
          %p357 = scmp.lt.s32.totalorder %s356, 2
          %s358 = scalar_select %p357, %s356, 2
          %p359 = scmp.gt.s32.totalorder %s358, 0
          %s360 = scalar_select %p359, %s358, 0
          %362 = vsyncadd %s352, 0
          %s363 = smul.addr %s360, 16
          %s364 = smul.addr %s363, 4
          %s365 = scalar_lea.hbm %s3, %s364
          %s366 = sshll.u32 %s365, 4
          %s367 = int_to_ptr.hbm [resolvable:$true] %s366
          %s368 = sshll.u32 %s355, 4
          %s369 = int_to_ptr.vmem [resolvable:$true] %s368
          %374 = dma.hbm_to_vmem [thread:$0]  %s367, 1024, %s369, %s352, 64, 64, 4
        $region40: #{tpu_custom_call.1} parent=27 // pred_fallthru
          _
        // Predicated region
        $region41: #{tpu_custom_call.1} parent=27 // pred_check
          %p375 = pneg %p184
        $region42: #{tpu_custom_call.1} parent=27 // pred_check_branch
          %377 = sbr.rel (%p375) target = $region44
        $region43: #{tpu_custom_call.1} parent=27 // pred_region
          %s378 = sand.u32 %s23, 1
          %s379 = scalar_lea.sflag [#allocation10], %s378
          %s380 = sand.u32 %s174, 1
          %s381 = smul.addr %s380, 4
          %s382 = scalar_lea.vmem [#allocation9], %s381
          %s383 = ssub.s32 %s31, 1
          %p384 = scmp.lt.s32.totalorder %s383, 2
          %s385 = scalar_select %p384, %s383, 2
          %p386 = scmp.gt.s32.totalorder %s385, 0
          %s387 = scalar_select %p386, %s385, 0
          %389 = vsyncadd %s379, 0
          %s390 = smul.addr %s387, 4
          %s391 = scalar_lea.hbm %s4, %s390
          %s393 = sshll.u32 %s391, 4
          %s394 = int_to_ptr.hbm [resolvable:$true] %s393
          %s395 = sshll.u32 %s382, 4
          %s396 = int_to_ptr.vmem [resolvable:$true] %s395
          %398 = dma.hbm_to_vmem [thread:$0]  %s394, 64, %s396, %s379
        $region44: #{tpu_custom_call.1} parent=27 // pred_fallthru
          _
      $region28: #{tpu_custom_call.1} parent=5 // pred_fallthru
        _
      %p399 = scmp.le.s32.totalorder 1, %s23
      %p400 = scmp.lt.s32.totalorder %s23, 6
      %p401 = pnand %p399, %p400
      %p402 = pneg %p401
      // Predicated region
      $region45: #{tpu_custom_call.1} parent=5 // pred_check
        _
      $region46: #{tpu_custom_call.1} parent=5 // pred_check_branch
        %404 = sbr.rel (%p401) target = $region48
      $region47: #{tpu_custom_call.1} parent=5 // pred_region
        %s405 = ssub.s32 %s23, 1
        %s406 = sand.u32 %s54, 1
        %s407 = scalar_lea.sflag [#allocation4], %s406
        %s408 = sand.u32 %s54, 1
        %s409 = smul.addr %s408, 48
        %s410 = scalar_lea.vmem [#allocation3], %s409
        // Predicated region
        $region49: #{tpu_custom_call.1} parent=47 // pred_check
          %p411 = pneg %p67
        $region50: #{tpu_custom_call.1} parent=47 // pred_check_branch
          %413 = sbr.rel (%p411) target = $region52
        $region51: #{tpu_custom_call.1} parent=47 // pred_region
          %415 = dma.done %s407, 768
        $region52: #{tpu_custom_call.1} parent=47 // pred_fallthru
          _
        %s416 = sand.u32 %s28, 1
        %s417 = scalar_lea.sflag [#allocation7], %s416
        %s418 = sand.u32 %s84, 1
        %s419 = smul.addr %s418, 384
        %s420 = scalar_lea.vmem [#allocation6], %s419
        // Predicated region
        $region53: #{tpu_custom_call.1} parent=47 // pred_check
          %p421 = pneg %p97
        $region54: #{tpu_custom_call.1} parent=47 // pred_check_branch
          %423 = sbr.rel (%p421) target = $region56
        $region55: #{tpu_custom_call.1} parent=47 // pred_region
          %425 = dma.done %s417, 6144
        $region56: #{tpu_custom_call.1} parent=47 // pred_fallthru
          _
        %s426 = sand.u32 %s28, 1
        %s427 = scalar_lea.sflag [#allocation7], %s426
        %s428 = sand.u32 %s141, 1
        %s429 = smul.addr %s428, 64
        %s430 = scalar_lea.vmem [#allocation8], %s429
        // Predicated region
        $region57: #{tpu_custom_call.1} parent=47 // pred_check
          %p431 = pneg %p154
        $region58: #{tpu_custom_call.1} parent=47 // pred_check_branch
          %433 = sbr.rel (%p431) target = $region60
        $region59: #{tpu_custom_call.1} parent=47 // pred_region
          %435 = dma.done %s427, 1024
        $region60: #{tpu_custom_call.1} parent=47 // pred_fallthru
          _
        %s436 = sand.u32 %s28, 1
        %s437 = scalar_lea.sflag [#allocation10], %s436
        %s438 = sand.u32 %s177, 1
        %s439 = smul.addr %s438, 4
        %s440 = scalar_lea.vmem [#allocation9], %s439
        // Predicated region
        $region61: #{tpu_custom_call.1} parent=47 // pred_check
          %p441 = pneg %p190
        $region62: #{tpu_custom_call.1} parent=47 // pred_check_branch
          %443 = sbr.rel (%p441) target = $region64
        $region63: #{tpu_custom_call.1} parent=47 // pred_region
          %445 = dma.done %s437, 64
        $region64: #{tpu_custom_call.1} parent=47 // pred_fallthru
          _
        // Predicated region
        $region65: #{tpu_custom_call.1} parent=47 // pred_check
          %p446 = pneg %p211
        $region66: #{tpu_custom_call.1} parent=47 // pred_check_branch
          %448 = sbr.rel (%p446) target = $region68
        $region67: #{tpu_custom_call.1} parent=47 // pred_region
          %450 = dma.done [#allocation10], 1024
        $region68: #{tpu_custom_call.1} parent=47 // pred_fallthru
          _
        %s451 = sand.u32 %s54, 1
        %s452 = scalar_lea.sflag [#allocation4], %s451
        %s453 = sand.u32 %s54, 1
        %s454 = smul.addr %s453, 48
        %s455 = scalar_lea.vmem [#allocation3], %s454
        %p456 = pneg %p67
        %p457 = pneg %p64
        %s458 = sand.u32 %s28, 1
        %s459 = scalar_lea.sflag [#allocation7], %s458
        %s460 = sand.u32 %s84, 1
        %s461 = smul.addr %s460, 384
        %s462 = scalar_lea.vmem [#allocation6], %s461
        %p463 = pneg %p97
        %p464 = pneg %p94
        %p465 = pneg %p118
        %p466 = pneg %p115
        %s467 = sand.u32 %s28, 1
        %s468 = scalar_lea.sflag [#allocation7], %s467
        %s469 = sand.u32 %s141, 1
        %s470 = smul.addr %s469, 64
        %s471 = scalar_lea.vmem [#allocation8], %s470
        %p472 = pneg %p154
        %p473 = pneg %p151
        %s474 = sand.u32 %s28, 1
        %s475 = scalar_lea.sflag [#allocation10], %s474
        %s476 = sand.u32 %s177, 1
        %s477 = smul.addr %s476, 4
        %s478 = scalar_lea.vmem [#allocation9], %s477
        %p479 = pneg %p190
        %p480 = pneg %p187
        %p481 = pneg %p211
        %p482 = pneg %p208
        %p483 = pneg %p232
        %p484 = pneg %p229
        %p485 = pneg %p258
        %p486 = pneg %p255
        %p487 = scmp.lt.s32.totalorder %s33, 0
        %s488 = scalar_select %p487, %s33, 0
        %s489 = smul.u32 2, %s32
        %s490 = smul.u32 6, %s488
        %p491 = scmp.lt.s32.totalorder %s33, 0
        %s492 = scalar_select %p491, %s33, 0
        %s493 = smul.u32 96, %s492
        %s494 = ssub.s32 %s33, 1
        %p495 = scmp.lt.s32.totalorder %s494, 2
        %s496 = scalar_select %p495, %s494, 2
        %p497 = scmp.gt.s32.totalorder %s496, 0
        %s498 = scalar_select %p497, %s496, 0
        %s499 = ssub.s32 %s33, 1
        %p500 = scmp.lt.s32.totalorder %s499, 2
        %s501 = scalar_select %p500, %s499, 2
        %p502 = scmp.gt.s32.totalorder %s501, 0
        %s503 = scalar_select %p502, %s501, 0
        %s504 = smul.u32 2, %s32
        %p505 = scmp.eq.s32.totalorder %s33, 0
        // Predicated region
        $region69: #{tpu_custom_call.1} parent=47 // pred_check
          %p506 = pneg %p505
        $region70: #{tpu_custom_call.1} parent=47 // pred_check_branch
          %508 = sbr.rel (%p506) target = $region72
        $region71: #{tpu_custom_call.1} parent=47 // pred_region
          %509 = vst [vmem:[#allocation2] sm:$0xff] 0.0
          %510 = vst [vmem:[#allocation2 + $0x8] sm:$0xff] 0.0
        $region72: #{tpu_custom_call.1} parent=47 // pred_fallthru
          _
        %p511 = scmp.lt.s32.totalorder %s33, 1
        // Predicated region
        $region73: #{tpu_custom_call.1} parent=47 // pred_check
          %p512 = pneg %p511
        $region74: #{tpu_custom_call.1} parent=47 // pred_check_branch
          %514 = sbr.rel (%p512) target = $region76
        $region75: #{tpu_custom_call.1} parent=47 // pred_region
          %v515 = vld [vmem:[#allocation2] sm:$0xff]
          %v516 = vld [vmem:[#allocation2 + $0x8] sm:$0xff]
          %v517 = vld [vmem:[%s410] sm:$0xff]
          %v518 = vld [vmem:[%s410 + $0x8] sm:$0xff]
          %v519 = vld [vmem:[%s410 + $0x10] sm:$0xff]
          %v520 = vld [vmem:[%s410 + $0x18] sm:$0xff]
          %v521 = vld [vmem:[%s410 + $0x20] sm:$0xff]
          %v522 = vld [vmem:[%s410 + $0x28] sm:$0xff]
          %v523 = vld [vmem:[%s420] sm:$0xf]
          %v524 = vld [vmem:[%s420 + $0x4] sm:$0xf]
          %v525 = vld [vmem:[%s420 + $0x8] sm:$0xf]
          %v526 = vld [vmem:[%s420 + $0xc] sm:$0xf]
          %v527 = vld [vmem:[%s420 + $0x10] sm:$0xf]
          %v528 = vld [vmem:[%s420 + $0x14] sm:$0xf]
          %v529 = vld [vmem:[%s420 + $0x18] sm:$0xf]
          %v530 = vld [vmem:[%s420 + $0x1c] sm:$0xf]
          %v531 = vld [vmem:[%s420 + $0x20] sm:$0xf]
          %v532 = vld [vmem:[%s420 + $0x24] sm:$0xf]
          %v533 = vld [vmem:[%s420 + $0x28] sm:$0xf]
          %v534 = vld [vmem:[%s420 + $0x2c] sm:$0xf]
          %v535 = vld [vmem:[%s420 + $0x30] sm:$0xf]
          %v536 = vld [vmem:[%s420 + $0x34] sm:$0xf]
          %v537 = vld [vmem:[%s420 + $0x38] sm:$0xf]
          %v538 = vld [vmem:[%s420 + $0x3c] sm:$0xf]
          %v539 = vld [vmem:[%s420 + $0x40] sm:$0xf]
          %v540 = vld [vmem:[%s420 + $0x44] sm:$0xf]
          %v541 = vld [vmem:[%s420 + $0x48] sm:$0xf]
          %v542 = vld [vmem:[%s420 + $0x4c] sm:$0xf]
          %v543 = vld [vmem:[%s420 + $0x50] sm:$0xf]
          %v544 = vld [vmem:[%s420 + $0x54] sm:$0xf]
          %v545 = vld [vmem:[%s420 + $0x58] sm:$0xf]
          %v546 = vld [vmem:[%s420 + $0x5c] sm:$0xf]
          %v547 = vld [vmem:[%s420 + $0x60] sm:$0xf]
          %v548 = vld [vmem:[%s420 + $0x64] sm:$0xf]
          %v549 = vld [vmem:[%s420 + $0x68] sm:$0xf]
          %v550 = vld [vmem:[%s420 + $0x6c] sm:$0xf]
          %v551 = vld [vmem:[%s420 + $0x70] sm:$0xf]
          %v552 = vld [vmem:[%s420 + $0x74] sm:$0xf]
          %v553 = vld [vmem:[%s420 + $0x78] sm:$0xf]
          %v554 = vld [vmem:[%s420 + $0x7c] sm:$0xf]
          %v555 = vld [vmem:[%s420 + $0x80] sm:$0xf]
          %v556 = vld [vmem:[%s420 + $0x84] sm:$0xf]
          %v557 = vld [vmem:[%s420 + $0x88] sm:$0xf]
          %v558 = vld [vmem:[%s420 + $0x8c] sm:$0xf]
          %v559 = vld [vmem:[%s420 + $0x90] sm:$0xf]
          %v560 = vld [vmem:[%s420 + $0x94] sm:$0xf]
          %v561 = vld [vmem:[%s420 + $0x98] sm:$0xf]
          %v562 = vld [vmem:[%s420 + $0x9c] sm:$0xf]
          %v563 = vld [vmem:[%s420 + $0xa0] sm:$0xf]
          %v564 = vld [vmem:[%s420 + $0xa4] sm:$0xf]
          %v565 = vld [vmem:[%s420 + $0xa8] sm:$0xf]
          %v566 = vld [vmem:[%s420 + $0xac] sm:$0xf]
          %v567 = vld [vmem:[%s420 + $0xb0] sm:$0xf]
          %v568 = vld [vmem:[%s420 + $0xb4] sm:$0xf]
          %v569 = vld [vmem:[%s420 + $0xb8] sm:$0xf]
          %v570 = vld [vmem:[%s420 + $0xbc] sm:$0xf]
          %v571 = vld [vmem:[%s420 + $0xc0] sm:$0xf]
          %v572 = vld [vmem:[%s420 + $0xc4] sm:$0xf]
          %v573 = vld [vmem:[%s420 + $0xc8] sm:$0xf]
          %v574 = vld [vmem:[%s420 + $0xcc] sm:$0xf]
          %v575 = vld [vmem:[%s420 + $0xd0] sm:$0xf]
          %v576 = vld [vmem:[%s420 + $0xd4] sm:$0xf]
          %v577 = vld [vmem:[%s420 + $0xd8] sm:$0xf]
          %v578 = vld [vmem:[%s420 + $0xdc] sm:$0xf]
          %v579 = vld [vmem:[%s420 + $0xe0] sm:$0xf]
          %v580 = vld [vmem:[%s420 + $0xe4] sm:$0xf]
          %v581 = vld [vmem:[%s420 + $0xe8] sm:$0xf]
          %v582 = vld [vmem:[%s420 + $0xec] sm:$0xf]
          %v583 = vld [vmem:[%s420 + $0xf0] sm:$0xf]
          %v584 = vld [vmem:[%s420 + $0xf4] sm:$0xf]
          %v585 = vld [vmem:[%s420 + $0xf8] sm:$0xf]
          %v586 = vld [vmem:[%s420 + $0xfc] sm:$0xf]
          %v587 = vld [vmem:[%s420 + $0x100] sm:$0xf]
          %v588 = vld [vmem:[%s420 + $0x104] sm:$0xf]
          %v589 = vld [vmem:[%s420 + $0x108] sm:$0xf]
          %v590 = vld [vmem:[%s420 + $0x10c] sm:$0xf]
          %v591 = vld [vmem:[%s420 + $0x110] sm:$0xf]
          %v592 = vld [vmem:[%s420 + $0x114] sm:$0xf]
          %v593 = vld [vmem:[%s420 + $0x118] sm:$0xf]
          %v594 = vld [vmem:[%s420 + $0x11c] sm:$0xf]
          %v595 = vld [vmem:[%s420 + $0x120] sm:$0xf]
          %v596 = vld [vmem:[%s420 + $0x124] sm:$0xf]
          %v597 = vld [vmem:[%s420 + $0x128] sm:$0xf]
          %v598 = vld [vmem:[%s420 + $0x12c] sm:$0xf]
          %v599 = vld [vmem:[%s420 + $0x130] sm:$0xf]
          %v600 = vld [vmem:[%s420 + $0x134] sm:$0xf]
          %v601 = vld [vmem:[%s420 + $0x138] sm:$0xf]
          %v602 = vld [vmem:[%s420 + $0x13c] sm:$0xf]
          %v603 = vld [vmem:[%s420 + $0x140] sm:$0xf]
          %v604 = vld [vmem:[%s420 + $0x144] sm:$0xf]
          %v605 = vld [vmem:[%s420 + $0x148] sm:$0xf]
          %v606 = vld [vmem:[%s420 + $0x14c] sm:$0xf]
          %v607 = vld [vmem:[%s420 + $0x150] sm:$0xf]
          %v608 = vld [vmem:[%s420 + $0x154] sm:$0xf]
          %v609 = vld [vmem:[%s420 + $0x158] sm:$0xf]
          %v610 = vld [vmem:[%s420 + $0x15c] sm:$0xf]
          %v611 = vld [vmem:[%s420 + $0x160] sm:$0xf]
          %v612 = vld [vmem:[%s420 + $0x164] sm:$0xf]
          %v613 = vld [vmem:[%s420 + $0x168] sm:$0xf]
          %v614 = vld [vmem:[%s420 + $0x16c] sm:$0xf]
          %v615 = vld [vmem:[%s420 + $0x170] sm:$0xf]
          %v616 = vld [vmem:[%s420 + $0x174] sm:$0xf]
          %v617 = vld [vmem:[%s420 + $0x178] sm:$0xf]
          %v618 = vld [vmem:[%s420 + $0x17c] sm:$0xf]
          %v625 = vunpack.c.l.b16 %v517
          %v626 = vunpack.c.h.b16 %v517
          %v627 = vunpack.c.l.b16 %v518
          %v628 = vunpack.c.h.b16 %v518
          %v629 = vunpack.c.l.b16 %v519
          %v630 = vunpack.c.h.b16 %v519
          %v631 = vunpack.c.l.b16 %v520
          %v632 = vunpack.c.h.b16 %v520
          %v633 = vunpack.c.l.b16 %v521
          %v634 = vunpack.c.h.b16 %v521
          %v635 = vunpack.c.l.b16 %v522
          %v636 = vunpack.c.h.b16 %v522
          %v637 = vpack.c.b16 %v631, %v625
          %v638 = vpack.c.b16 %v632, %v626
          %v639 = vpack.c.b16 %v633, %v627
          %v640 = vpack.c.b16 %v634, %v628
          %v641 = vpack.c.b16 %v635, %v629
          %v642 = vpack.c.b16 %v636, %v630
          %v745 = vunpack.c.l.b16 %v523
          %v746 = vunpack.c.l.b16 %v524
          %v747 = vunpack.c.l.b16 %v525
          %v748 = vunpack.c.l.b16 %v526
          %v749 = vunpack.c.l.b16 %v527
          %v750 = vunpack.c.l.b16 %v528
          %v751 = vunpack.c.l.b16 %v529
          %v752 = vunpack.c.l.b16 %v530
          %v753 = vunpack.c.l.b16 %v531
          %v754 = vunpack.c.l.b16 %v532
          %v755 = vunpack.c.l.b16 %v533
          %v756 = vunpack.c.l.b16 %v534
          %v757 = vunpack.c.l.b16 %v535
          %v758 = vunpack.c.l.b16 %v536
          %v759 = vunpack.c.l.b16 %v537
          %v760 = vunpack.c.l.b16 %v538
          %v761 = vunpack.c.l.b16 %v539
          %v762 = vunpack.c.l.b16 %v540
          %v763 = vunpack.c.l.b16 %v541
          %v764 = vunpack.c.l.b16 %v542
          %v765 = vunpack.c.l.b16 %v543
          %v766 = vunpack.c.l.b16 %v544
          %v767 = vunpack.c.l.b16 %v545
          %v768 = vunpack.c.l.b16 %v546
          %v769 = vunpack.c.l.b16 %v547
          %v770 = vunpack.c.l.b16 %v548
          %v771 = vunpack.c.l.b16 %v549
          %v772 = vunpack.c.l.b16 %v550
          %v773 = vunpack.c.l.b16 %v551
          %v774 = vunpack.c.l.b16 %v552
          %v775 = vunpack.c.l.b16 %v553
          %v776 = vunpack.c.l.b16 %v554
          %v777 = vunpack.c.l.b16 %v555
          %v778 = vunpack.c.l.b16 %v556
          %v779 = vunpack.c.l.b16 %v557
          %v780 = vunpack.c.l.b16 %v558
          %v781 = vunpack.c.l.b16 %v559
          %v782 = vunpack.c.l.b16 %v560
          %v783 = vunpack.c.l.b16 %v561
          %v784 = vunpack.c.l.b16 %v562
          %v785 = vunpack.c.l.b16 %v563
          %v786 = vunpack.c.l.b16 %v564
          %v787 = vunpack.c.l.b16 %v565
          %v788 = vunpack.c.l.b16 %v566
          %v789 = vunpack.c.l.b16 %v567
          %v790 = vunpack.c.l.b16 %v568
          %v791 = vunpack.c.l.b16 %v569
          %v792 = vunpack.c.l.b16 %v570
          %v793 = vunpack.c.l.b16 %v571
          %v794 = vunpack.c.l.b16 %v572
          %v795 = vunpack.c.l.b16 %v573
          %v796 = vunpack.c.l.b16 %v574
          %v797 = vunpack.c.l.b16 %v575
          %v798 = vunpack.c.l.b16 %v576
          %v799 = vunpack.c.l.b16 %v577
          %v800 = vunpack.c.l.b16 %v578
          %v801 = vunpack.c.l.b16 %v579
          %v802 = vunpack.c.l.b16 %v580
          %v803 = vunpack.c.l.b16 %v581
          %v804 = vunpack.c.l.b16 %v582
          %v805 = vunpack.c.l.b16 %v583
          %v806 = vunpack.c.l.b16 %v584
          %v807 = vunpack.c.l.b16 %v585
          %v808 = vunpack.c.l.b16 %v586
          %v809 = vunpack.c.l.b16 %v587
          %v810 = vunpack.c.l.b16 %v588
          %v811 = vunpack.c.l.b16 %v589
          %v812 = vunpack.c.l.b16 %v590
          %v813 = vunpack.c.l.b16 %v591
          %v814 = vunpack.c.l.b16 %v592
          %v815 = vunpack.c.l.b16 %v593
          %v816 = vunpack.c.l.b16 %v594
          %v817 = vunpack.c.l.b16 %v595
          %v818 = vunpack.c.l.b16 %v596
          %v819 = vunpack.c.l.b16 %v597
          %v820 = vunpack.c.l.b16 %v598
          %v821 = vunpack.c.l.b16 %v599
          %v822 = vunpack.c.l.b16 %v600
          %v823 = vunpack.c.l.b16 %v601
          %v824 = vunpack.c.l.b16 %v602
          %v825 = vunpack.c.l.b16 %v603
          %v826 = vunpack.c.l.b16 %v604
          %v827 = vunpack.c.l.b16 %v605
          %v828 = vunpack.c.l.b16 %v606
          %v829 = vunpack.c.l.b16 %v607
          %v830 = vunpack.c.l.b16 %v608
          %v831 = vunpack.c.l.b16 %v609
          %v832 = vunpack.c.l.b16 %v610
          %v833 = vunpack.c.l.b16 %v611
          %v834 = vunpack.c.l.b16 %v612
          %v835 = vunpack.c.l.b16 %v613
          %v836 = vunpack.c.l.b16 %v614
          %v837 = vunpack.c.l.b16 %v615
          %v838 = vunpack.c.l.b16 %v616
          %v839 = vunpack.c.l.b16 %v617
          %v840 = vunpack.c.l.b16 %v618
          %v841 = vpack.c.b16 %v746, %v745
          %v842 = vpack.c.b16 %v748, %v747
          %v843 = vpack.c.b16 %v750, %v749
          %v844 = vpack.c.b16 %v752, %v751
          %v845 = vpack.c.b16 %v754, %v753
          %v846 = vpack.c.b16 %v756, %v755
          %v847 = vpack.c.b16 %v758, %v757
          %v848 = vpack.c.b16 %v760, %v759
          %v849 = vpack.c.b16 %v762, %v761
          %v850 = vpack.c.b16 %v764, %v763
          %v851 = vpack.c.b16 %v766, %v765
          %v852 = vpack.c.b16 %v768, %v767
          %v853 = vpack.c.b16 %v770, %v769
          %v854 = vpack.c.b16 %v772, %v771
          %v855 = vpack.c.b16 %v774, %v773
          %v856 = vpack.c.b16 %v776, %v775
          %v857 = vpack.c.b16 %v778, %v777
          %v858 = vpack.c.b16 %v780, %v779
          %v859 = vpack.c.b16 %v782, %v781
          %v860 = vpack.c.b16 %v784, %v783
          %v861 = vpack.c.b16 %v786, %v785
          %v862 = vpack.c.b16 %v788, %v787
          %v863 = vpack.c.b16 %v790, %v789
          %v864 = vpack.c.b16 %v792, %v791
          %v865 = vpack.c.b16 %v794, %v793
          %v866 = vpack.c.b16 %v796, %v795
          %v867 = vpack.c.b16 %v798, %v797
          %v868 = vpack.c.b16 %v800, %v799
          %v869 = vpack.c.b16 %v802, %v801
          %v870 = vpack.c.b16 %v804, %v803
          %v871 = vpack.c.b16 %v806, %v805
          %v872 = vpack.c.b16 %v808, %v807
          %v873 = vpack.c.b16 %v810, %v809
          %v874 = vpack.c.b16 %v812, %v811
          %v875 = vpack.c.b16 %v814, %v813
          %v876 = vpack.c.b16 %v816, %v815
          %v877 = vpack.c.b16 %v818, %v817
          %v878 = vpack.c.b16 %v820, %v819
          %v879 = vpack.c.b16 %v822, %v821
          %v880 = vpack.c.b16 %v824, %v823
          %v881 = vpack.c.b16 %v826, %v825
          %v882 = vpack.c.b16 %v828, %v827
          %v883 = vpack.c.b16 %v830, %v829
          %v884 = vpack.c.b16 %v832, %v831
          %v885 = vpack.c.b16 %v834, %v833
          %v886 = vpack.c.b16 %v836, %v835
          %v887 = vpack.c.b16 %v838, %v837
          %v888 = vpack.c.b16 %v840, %v839
          %937 = vmatpush.bf16.msra.mxu0 %v848
          %938 = vmatpush.bf16.msra.mxu0 %v847
          %939 = vmatpush.bf16.msra.mxu0 %v846
          %940 = vmatpush.bf16.msra.mxu0 %v845
          %941 = vmatpush.bf16.msra.mxu0 %v844
          %942 = vmatpush.bf16.msra.mxu0 %v843
          %943 = vmatpush.bf16.msra.mxu0 %v842
          %944 = vmatpush.bf16.msra.mxu0 %v841
          %945 = vmatmul.bf16.gmra.mxu0 %v637
          %v946 = vpop.f32.mrf.mxu0
          %v947 = vadd.f32 0.0, %v946
          %v948 = vpop.f32.mrf.mxu0
          %v949 = vadd.f32 0.0, %v948
          %950 = vdwg.mxu0
          %951 = vmatpush.bf16.msra.mxu0 %v856
          %952 = vmatpush.bf16.msra.mxu0 %v855
          %953 = vmatpush.bf16.msra.mxu0 %v854
          %954 = vmatpush.bf16.msra.mxu0 %v853
          %955 = vmatpush.bf16.msra.mxu0 %v852
          %956 = vmatpush.bf16.msra.mxu0 %v851
          %957 = vmatpush.bf16.msra.mxu0 %v850
          %958 = vmatpush.bf16.msra.mxu0 %v849
          %959 = vmatmul.bf16.gmra.mxu0 %v638
          %v960 = vpop.f32.mrf.mxu0
          %v961 = vadd.f32 %v947, %v960
          %v962 = vpop.f32.mrf.mxu0
          %v963 = vadd.f32 %v949, %v962
          %964 = vdwg.mxu0
          %965 = vmatpush.bf16.msra.mxu0 %v864
          %966 = vmatpush.bf16.msra.mxu0 %v863
          %967 = vmatpush.bf16.msra.mxu0 %v862
          %968 = vmatpush.bf16.msra.mxu0 %v861
          %969 = vmatpush.bf16.msra.mxu0 %v860
          %970 = vmatpush.bf16.msra.mxu0 %v859
          %971 = vmatpush.bf16.msra.mxu0 %v858
          %972 = vmatpush.bf16.msra.mxu0 %v857
          %973 = vmatmul.bf16.gmra.mxu0 %v639
          %v974 = vpop.f32.mrf.mxu0
          %v975 = vadd.f32 %v961, %v974
          %v976 = vpop.f32.mrf.mxu0
          %v977 = vadd.f32 %v963, %v976
          %978 = vdwg.mxu0
          %979 = vmatpush.bf16.msra.mxu0 %v872
          %980 = vmatpush.bf16.msra.mxu0 %v871
          %981 = vmatpush.bf16.msra.mxu0 %v870
          %982 = vmatpush.bf16.msra.mxu0 %v869
          %983 = vmatpush.bf16.msra.mxu0 %v868
          %984 = vmatpush.bf16.msra.mxu0 %v867
          %985 = vmatpush.bf16.msra.mxu0 %v866
          %986 = vmatpush.bf16.msra.mxu0 %v865
          %987 = vmatmul.bf16.gmra.mxu0 %v640
          %v988 = vpop.f32.mrf.mxu0
          %v989 = vadd.f32 %v975, %v988
          %v990 = vpop.f32.mrf.mxu0
          %v991 = vadd.f32 %v977, %v990
          %992 = vdwg.mxu0
          %993 = vmatpush.bf16.msra.mxu0 %v880
          %994 = vmatpush.bf16.msra.mxu0 %v879
          %995 = vmatpush.bf16.msra.mxu0 %v878
          %996 = vmatpush.bf16.msra.mxu0 %v877
          %997 = vmatpush.bf16.msra.mxu0 %v876
          %998 = vmatpush.bf16.msra.mxu0 %v875
          %999 = vmatpush.bf16.msra.mxu0 %v874
          %1000 = vmatpush.bf16.msra.mxu0 %v873
          %1001 = vmatmul.bf16.gmra.mxu0 %v641
          %v1002 = vpop.f32.mrf.mxu0
          %v1003 = vadd.f32 %v989, %v1002
          %v1004 = vpop.f32.mrf.mxu0
          %v1005 = vadd.f32 %v991, %v1004
          %1006 = vdwg.mxu0
          %1007 = vmatpush.bf16.msra.mxu0 %v888
          %1008 = vmatpush.bf16.msra.mxu0 %v887
          %1009 = vmatpush.bf16.msra.mxu0 %v886
          %1010 = vmatpush.bf16.msra.mxu0 %v885
          %1011 = vmatpush.bf16.msra.mxu0 %v884
          %1012 = vmatpush.bf16.msra.mxu0 %v883
          %1013 = vmatpush.bf16.msra.mxu0 %v882
          %1014 = vmatpush.bf16.msra.mxu0 %v881
          %1015 = vmatmul.bf16.gmra.mxu0 %v642
          %v1016 = vpop.f32.mrf.mxu0
          %v1017 = vadd.f32 %v1003, %v1016
          %v1018 = vpop.f32.mrf.mxu0
          %v1019 = vadd.f32 %v1005, %v1018
          %1020 = vdwg.mxu0
          %v1021 = vadd.f32 %v515, %v1017
          %v1022 = vadd.f32 %v516, %v1019
          %1023 = vst [vmem:[#allocation2] sm:$0xff] %v1021
          %1024 = vst [vmem:[#allocation2 + $0x8] sm:$0xff] %v1022
        $region76: #{tpu_custom_call.1} parent=47 // pred_fallthru
          _
        // Predicated region
        $region77: #{tpu_custom_call.1} parent=47 // pred_check
          %p1025 = pneg %p505
        $region78: #{tpu_custom_call.1} parent=47 // pred_check_branch
          %1027 = sbr.rel (%p1025) target = $region80
        $region79: #{tpu_custom_call.1} parent=47 // pred_region
          %v1028 = vld [vmem:[#allocation2] sm:$0xff]
          %v1029 = vld [vmem:[#allocation2 + $0x8] sm:$0xff]
          %v1030 = vld [vmem:[%s2] sm:$0x1]
          %v1032 = vperm.slane %v1030, 0
          %v1034 = vadd.f32 %v1028, %v1032
          %v1035 = vadd.f32 %v1029, %v1032
          %1036 = vst [vmem:[#allocation2] sm:$0xff] %v1034
          %1037 = vst [vmem:[#allocation2 + $0x8] sm:$0xff] %v1035
        $region80: #{tpu_custom_call.1} parent=47 // pred_fallthru
          _
        %p1038 = scmp.ge.s32.totalorder %s33, 1
        %p1039 = scmp.lt.s32.totalorder %s33, 4
        %p1040 = pnand %p1038, %p1039
        %p1041 = pneg %p1040
        // Predicated region
        $region81: #{tpu_custom_call.1} parent=47 // pred_check
          _
        $region82: #{tpu_custom_call.1} parent=47 // pred_check_branch
          %1043 = sbr.rel (%p1040) target = $region84
        $region83: #{tpu_custom_call.1} parent=47 // pred_region
          %v1044 = vld [vmem:[#allocation2] sm:$0xff]
          %v1045 = vld [vmem:[#allocation2 + $0x8] sm:$0xff]
          %v1046 = vld [vmem:[%s430] sm:$0xf]
          %v1047 = vld [vmem:[%s430 + $0x4] sm:$0xf]
          %v1048 = vld [vmem:[%s430 + $0x8] sm:$0xf]
          %v1049 = vld [vmem:[%s430 + $0xc] sm:$0xf]
          %v1050 = vld [vmem:[%s430 + $0x10] sm:$0xf]
          %v1051 = vld [vmem:[%s430 + $0x14] sm:$0xf]
          %v1052 = vld [vmem:[%s430 + $0x18] sm:$0xf]
          %v1053 = vld [vmem:[%s430 + $0x1c] sm:$0xf]
          %v1054 = vld [vmem:[%s430 + $0x20] sm:$0xf]
          %v1055 = vld [vmem:[%s430 + $0x24] sm:$0xf]
          %v1056 = vld [vmem:[%s430 + $0x28] sm:$0xf]
          %v1057 = vld [vmem:[%s430 + $0x2c] sm:$0xf]
          %v1058 = vld [vmem:[%s430 + $0x30] sm:$0xf]
          %v1059 = vld [vmem:[%s430 + $0x34] sm:$0xf]
          %v1060 = vld [vmem:[%s430 + $0x38] sm:$0xf]
          %v1061 = vld [vmem:[%s430 + $0x3c] sm:$0xf]
          %v1062 = vld [vmem:[%s440] sm:$0x7]
          %v1063 = vpack.c.bf16 %v1045, %v1044
          %v1064 = vperm.slane %v1062, 0
          %v1081 = vunpack.c.l.b16 %v1046
          %v1082 = vunpack.c.l.b16 %v1047
          %v1083 = vunpack.c.l.b16 %v1048
          %v1084 = vunpack.c.l.b16 %v1049
          %v1085 = vunpack.c.l.b16 %v1050
          %v1086 = vunpack.c.l.b16 %v1051
          %v1087 = vunpack.c.l.b16 %v1052
          %v1088 = vunpack.c.l.b16 %v1053
          %v1089 = vunpack.c.l.b16 %v1054
          %v1090 = vunpack.c.l.b16 %v1055
          %v1091 = vunpack.c.l.b16 %v1056
          %v1092 = vunpack.c.l.b16 %v1057
          %v1093 = vunpack.c.l.b16 %v1058
          %v1094 = vunpack.c.l.b16 %v1059
          %v1095 = vunpack.c.l.b16 %v1060
          %v1096 = vunpack.c.l.b16 %v1061
          %v1097 = vpack.c.b16 %v1082, %v1081
          %v1098 = vpack.c.b16 %v1084, %v1083
          %v1099 = vpack.c.b16 %v1086, %v1085
          %v1100 = vpack.c.b16 %v1088, %v1087
          %v1101 = vpack.c.b16 %v1090, %v1089
          %v1102 = vpack.c.b16 %v1092, %v1091
          %v1103 = vpack.c.b16 %v1094, %v1093
          %v1104 = vpack.c.b16 %v1096, %v1095
          %1113 = vmatpush.bf16.msra.mxu0 %v1104
          %1114 = vmatpush.bf16.msra.mxu0 %v1103
          %1115 = vmatpush.bf16.msra.mxu0 %v1102
          %1116 = vmatpush.bf16.msra.mxu0 %v1101
          %1117 = vmatpush.bf16.msra.mxu0 %v1100
          %1118 = vmatpush.bf16.msra.mxu0 %v1099
          %1119 = vmatpush.bf16.msra.mxu0 %v1098
          %1120 = vmatpush.bf16.msra.mxu0 %v1097
          %1121 = vmatmul.bf16.gmra.mxu0 %v1063
          %v1122 = vpop.f32.mrf.mxu0
          %v1123 = vadd.f32 %v1064, %v1122
          %v1124 = vpop.f32.mrf.mxu0
          %v1125 = vadd.f32 %v1064, %v1124
          %1126 = vdwg.mxu0
          %1127 = vadd.xlane.f32.xlu0 %v1123
          %v1128 = vpop.xlane.xlu0 %1127
          %1129 = vadd.xlane.f32.xlu0 %v1125
          %v1130 = vpop.xlane.xlu0 %1129
          %v1131 = vmul.f32 %v1128, 0.0078125
          %v1132 = vmul.f32 %v1130, 0.0078125
          %v1133 = vsub.f32 %v1123, %v1131
          %v1134 = vsub.f32 %v1125, %v1132
          %v1135 = vmul.f32 %v1133, %v1133
          %v1136 = vmul.f32 %v1134, %v1134
          %1137 = vadd.xlane.f32.xlu0 %v1135
          %v1138 = vpop.xlane.xlu0 %1137
          %1139 = vadd.xlane.f32.xlu0 %v1136
          %v1140 = vpop.xlane.xlu0 %1139
          %v1141 = vmul.f32 %v1138, 0.0078125
          %v1142 = vmul.f32 %v1140, 0.0078125
          %v1143 = vadd.f32 %v1141, 1e-05
          %v1144 = vadd.f32 %v1142, 1e-05
          %v1145 = vrsqrt.pop %v1143
          %v1146 = vmul.f32 %v1145, %v1143
          %v1147 = vmul.f32 %v1146, %v1145
          %v1148 = vmul.f32 0.5, %v1147
          %v1149 = vsub.f32 1.5, %v1148
          %v1150 = vmul.f32 %v1145, %v1149
          %vm1151 = vweird.f32 %v1143
          %vm1152 = vweird.f32 %v1145
          %vm1153 = vmor %vm1151, %vm1152
          %v1154 = vsel %vm1153, %v1145, %v1150
          %v1155 = vrsqrt.pop %v1144
          %v1156 = vmul.f32 %v1155, %v1144
          %v1157 = vmul.f32 %v1156, %v1155
          %v1158 = vmul.f32 0.5, %v1157
          %v1159 = vsub.f32 1.5, %v1158
          %v1160 = vmul.f32 %v1155, %v1159
          %vm1161 = vweird.f32 %v1144
          %vm1162 = vweird.f32 %v1155
          %vm1163 = vmor %vm1161, %vm1162
          %v1164 = vsel %vm1163, %v1155, %v1160
          %v1165 = vperm.slane %v1062, 1
          %v1166 = vmul.f32 %v1165, %v1154
          %v1167 = vmul.f32 %v1165, %v1164
          %v1168 = vmul.f32 %v1133, %v1166
          %v1169 = vmul.f32 %v1134, %v1167
          %v1170 = vperm.slane %v1062, 2
          %v1171 = vadd.f32 %v1168, %v1170
          %v1172 = vadd.f32 %v1169, %v1170
          %v1173 = vadd.f32 %v1171, %v1044
          %v1174 = vadd.f32 %v1172, %v1045
          %v1175 = vmax.f32 %v1173, 0.0
          %v1176 = vmax.f32 %v1174, 0.0
          %1177 = vst [vmem:[#allocation2] sm:$0xff] %v1175
          %1178 = vst [vmem:[#allocation2 + $0x8] sm:$0xff] %v1176
        $region84: #{tpu_custom_call.1} parent=47 // pred_fallthru
          _
        %p1179 = scmp.eq.s32.totalorder %s33, 4
        // Predicated region
        $region85: #{tpu_custom_call.1} parent=47 // pred_check
          %p1180 = pneg %p1179
        $region86: #{tpu_custom_call.1} parent=47 // pred_check_branch
          %1182 = sbr.rel (%p1180) target = $region88
        $region87: #{tpu_custom_call.1} parent=47 // pred_region
          %v1183 = vld [vmem:[#allocation2] sm:$0xff]
          %v1184 = vld [vmem:[#allocation2 + $0x8] sm:$0xff]
          %v1185 = vpack.c.bf16 %v1184, %v1183
          %v1186 = vld [vmem:[#allocation11] sm:$0xf]
          %v1187 = vld [vmem:[#allocation11 + $0x4] sm:$0xf]
          %v1188 = vld [vmem:[#allocation11 + $0x8] sm:$0xf]
          %v1189 = vld [vmem:[#allocation11 + $0xc] sm:$0xf]
          %v1190 = vld [vmem:[#allocation11 + $0x10] sm:$0xf]
          %v1191 = vld [vmem:[#allocation11 + $0x14] sm:$0xf]
          %v1192 = vld [vmem:[#allocation11 + $0x18] sm:$0xf]
          %v1193 = vld [vmem:[#allocation11 + $0x1c] sm:$0xf]
          %v1194 = vld [vmem:[#allocation11 + $0x20] sm:$0xf]
          %v1195 = vld [vmem:[#allocation11 + $0x24] sm:$0xf]
          %v1196 = vld [vmem:[#allocation11 + $0x28] sm:$0xf]
          %v1197 = vld [vmem:[#allocation11 + $0x2c] sm:$0xf]
          %v1198 = vld [vmem:[#allocation11 + $0x30] sm:$0xf]
          %v1199 = vld [vmem:[#allocation11 + $0x34] sm:$0xf]
          %v1200 = vld [vmem:[#allocation11 + $0x38] sm:$0xf]
          %v1201 = vld [vmem:[#allocation11 + $0x3c] sm:$0xf]
          %v1202 = vld [vmem:[%s6] sm:$0x1]
          %v1204 = vperm.slane %v1202, 0
          %v1222 = vunpack.c.l.b16 %v1186
          %v1223 = vunpack.c.l.b16 %v1187
          %v1224 = vunpack.c.l.b16 %v1188
          %v1225 = vunpack.c.l.b16 %v1189
          %v1226 = vunpack.c.l.b16 %v1190
          %v1227 = vunpack.c.l.b16 %v1191
          %v1228 = vunpack.c.l.b16 %v1192
          %v1229 = vunpack.c.l.b16 %v1193
          %v1230 = vunpack.c.l.b16 %v1194
          %v1231 = vunpack.c.l.b16 %v1195
          %v1232 = vunpack.c.l.b16 %v1196
          %v1233 = vunpack.c.l.b16 %v1197
          %v1234 = vunpack.c.l.b16 %v1198
          %v1235 = vunpack.c.l.b16 %v1199
          %v1236 = vunpack.c.l.b16 %v1200
          %v1237 = vunpack.c.l.b16 %v1201
          %v1238 = vpack.c.b16 %v1223, %v1222
          %v1239 = vpack.c.b16 %v1225, %v1224
          %v1240 = vpack.c.b16 %v1227, %v1226
          %v1241 = vpack.c.b16 %v1229, %v1228
          %v1242 = vpack.c.b16 %v1231, %v1230
          %v1243 = vpack.c.b16 %v1233, %v1232
          %v1244 = vpack.c.b16 %v1235, %v1234
          %v1245 = vpack.c.b16 %v1237, %v1236
          %1254 = vmatpush.bf16.msra.mxu0 %v1245
          %1255 = vmatpush.bf16.msra.mxu0 %v1244
          %1256 = vmatpush.bf16.msra.mxu0 %v1243
          %1257 = vmatpush.bf16.msra.mxu0 %v1242
          %1258 = vmatpush.bf16.msra.mxu0 %v1241
          %1259 = vmatpush.bf16.msra.mxu0 %v1240
          %1260 = vmatpush.bf16.msra.mxu0 %v1239
          %1261 = vmatpush.bf16.msra.mxu0 %v1238
          %1262 = vmatmul.bf16.gmra.mxu0 %v1185
          %v1263 = vpop.f32.mrf.mxu0
          %v1264 = vadd.f32 %v1204, %v1263
          %v1265 = vpop.f32.mrf.mxu0
          %v1266 = vadd.f32 %v1204, %v1265
          %1267 = vdwg.mxu0
          %1268 = vst [vmem:[#allocation12] sm:$0xff] %v1264
          %1269 = vst [vmem:[#allocation12 + $0x8] sm:$0xff] %v1266
        $region88: #{tpu_custom_call.1} parent=47 // pred_fallthru
          _
        // Predicated region
        $region89: #{tpu_custom_call.1} parent=47 // pred_check
          %p1270 = pneg %p255
        $region90: #{tpu_custom_call.1} parent=47 // pred_check_branch
          %1272 = sbr.rel (%p1270) target = $region92
        $region91: #{tpu_custom_call.1} parent=47 // pred_region
          %s1273 = smul.u32 2, %s32
          %1275 = vsyncadd [#allocation5], 0
          %s1276 = smul.addr %s1273, 8
          %s1277 = scalar_lea.hbm %s7, %s1276
          %s1278 = sshll.u32 [#allocation12], 4
          %s1279 = int_to_ptr.vmem [resolvable:$true] %s1278
          %s1280 = sshll.u32 %s1277, 4
          %s1281 = int_to_ptr.hbm [resolvable:$true] %s1280
          %1286 = dma.vmem_to_hbm [thread:$0]  %s1279, 256, %s1281, [#allocation5], 128, 128, 8
        $region92: #{tpu_custom_call.1} parent=47 // pred_fallthru
          _
        // Predicated region
        $region93: #{tpu_custom_call.1} parent=47 // pred_check
          %p1287 = pneg %p255
        $region94: #{tpu_custom_call.1} parent=47 // pred_check_branch
          %1289 = sbr.rel (%p1287) target = $region96
        $region95: #{tpu_custom_call.1} parent=47 // pred_region
          %1291 = dma.done [#allocation5], 256
        $region96: #{tpu_custom_call.1} parent=47 // pred_fallthru
          _
      $region48: #{tpu_custom_call.1} parent=5 // pred_fallthru
        _
      %p1292 = scmp.le.s32.totalorder 2, %s23
      // Predicated region
      $region97: #{tpu_custom_call.1} parent=5 // pred_check
        %p1293 = pneg %p1292
      $region98: #{tpu_custom_call.1} parent=5 // pred_check_branch
        %1295 = sbr.rel (%p1293) target = $region100
      $region99: #{tpu_custom_call.1} parent=5 // pred_region
        %s1296 = ssub.s32 %s23, 2
      $region100: #{tpu_custom_call.1} parent=5 // pred_fallthru
        _
    $region6: #{tpu_custom_call.1} parent=1 // loop_footer
      %s27 = sadd.s32 1, %s23
    $region7: #{tpu_custom_call.1} parent=1 // loop_footer_branch
      %22 = sbr.rel target = $region3
    $region8: #{tpu_custom_call.1} parent=1 // loop_exit
      _
    %1297 = vsyncpa [#allocation4], 1
    %s1298 = scalar_lea.sflag [#allocation4], 1
    %1299 = vsyncpa %s1298, 1
    %1300 = vsyncpa [#allocation7], 1
    %s1301 = scalar_lea.sflag [#allocation7], 1
    %1302 = vsyncpa %s1301, 1
    %1303 = vsyncpa [#allocation10], 1
    %s1304 = scalar_lea.sflag [#allocation10], 1
    %1305 = vsyncpa %s1304, 1
    %1306 = vsyncpa [#allocation5], 1
    %s1307 = scalar_lea.sflag [#allocation5], 1
    %1308 = vsyncpa %s1307, 1

</llo_original>
